<compile_context>
chip_gen: v6e
topology: v6e:2x2x1
jax: 0.10.0
libtpu: 0.0.40
codegen_flags: <defaults>
</compile_context>

<pallas_src>
import functools

import jax
import jax.numpy as jnp
from jax import lax
from jax.experimental import pallas as pl
from jax.experimental.pallas import tpu as pltpu

_LANE = 128
_MAX_TILE_ROWS = 512   # rows of 128 lanes per channel per grid step
                       # (6 * 512 * 128 * 4B = 1.5 MiB per input block;
                       #  2 inputs x 2 pipeline buffers = 6 MiB, safe everywhere)


def _yolo_loss_kernel(pred_ref, targ_ref, out_ref, acc_ref, *,
                      n_valid, tile_rows, num_tiles, needs_mask,
                      lambda_coord, lambda_conf, lambda_class):
    # pred_ref / targ_ref : (6, tile_rows, 128) channel-major block in VMEM
    # acc_ref             : (tile_rows, 128) f32 VMEM scratch (resident)
    # out_ref             : (1, 1) f32 SMEM scalar output (resident)
    i = pl.program_id(0)

    @pl.when(i == 0)
    def _init():
        acc_ref[...] = jnp.zeros_like(acc_ref)
        out_ref[0, 0] = jnp.float32(0.0)

    p = pred_ref[...].astype(jnp.float32)
    t = targ_ref[...].astype(jnp.float32)

    # ---- IoU between predicted and target boxes (channels 0..3) ----
    px, py, pw, ph = p[0], p[1], p[2], p[3]
    tx, ty, tw, th = t[0], t[1], t[2], t[3]

    pred_x1 = px - pw * 0.5
    pred_y1 = py - ph * 0.5
    pred_x2 = px + pw * 0.5
    pred_y2 = py + ph * 0.5
    targ_x1 = tx - tw * 0.5
    targ_y1 = ty - th * 0.5
    targ_x2 = tx + tw * 0.5
    targ_y2 = ty + th * 0.5

    inter_w = jnp.maximum(jnp.minimum(pred_x2, targ_x2) -
                          jnp.maximum(pred_x1, targ_x1), 0.0)
    inter_h = jnp.maximum(jnp.minimum(pred_y2, targ_y2) -
                          jnp.maximum(pred_y1, targ_y1), 0.0)
    inter_area = inter_w * inter_h
    pred_area = (pred_x2 - pred_x1) * (pred_y2 - pred_y1)
    targ_area = (targ_x2 - targ_x1) * (targ_y2 - targ_y1)
    union_area = pred_area + targ_area - inter_area
    iou = inter_area / jnp.maximum(union_area, 1e-6)        # (tile_rows, 128)

    # ---- BCE-with-logits on both channels (conf=4, class=5) as one slab ----
    x = p[4:6]                                              # (2, tile_rows, 128)
    z = t[4:6]
    bce = (jnp.maximum(x, 0.0) - x * z +
           jnp.log1p(jnp.exp(-jnp.abs(x))))                 # EUP-heavy, cheap slot

    # ---- one fused per-element value, accumulated densely (no XLU per step) ----
    combined = (lambda_coord * iou +
                lambda_conf * bce[0] +
                lambda_class * bce[1])                      # (tile_rows, 128)

    if needs_mask:
        base = i * (tile_rows * _LANE)
        row = lax.broadcasted_iota(jnp.int32, (tile_rows, _LANE), 0)
        col = lax.broadcasted_iota(jnp.int32, (tile_rows, _LANE), 1)
        combined = jnp.where(base + row * _LANE + col < n_valid, combined, 0.0)

    acc_ref[...] += combined

    # ---- single cross-lane reduction + scalar store, only on the last step ----
    @pl.when(i == num_tiles - 1)
    def _finalize():
        out_ref[0, 0] = jnp.sum(acc_ref[...]) * jnp.float32(1.0 / n_valid)


def yolo_loss_iou(predictions, target, grid_size,
                  lambda_coord=1.0, lambda_conf=1.0, lambda_class=1.0):
    """Pallas implementation of YoloLossIou.forward. Returns a scalar float32."""
    preds = jnp.reshape(predictions, (-1, grid_size, grid_size, 6))
    targs = jnp.reshape(target, (-1, grid_size, grid_size, 6))
    preds = jnp.reshape(preds, (-1, 6))   # keep original dtype for DMA
    targs = jnp.reshape(targs, (-1, 6))
    n = preds.shape[0]

    if n <= _MAX_TILE_ROWS * _LANE:
        n_pad = max(1024, ((n + 1023) // 1024) * 1024)
        tile_rows = n_pad // _LANE
    else:
        chunk = _MAX_TILE_ROWS * _LANE
        n_pad = ((n + chunk - 1) // chunk) * chunk
        tile_rows = _MAX_TILE_ROWS
    r = n_pad // _LANE
    num_tiles = r // tile_rows
    needs_mask = (n != n_pad)

    def to_channel_major_tiles(a):
        # (N, 6) -> pad -> (6, R, 128) channel-major dense tiles, same dtype
        a = jnp.pad(a, ((0, n_pad - n), (0, 0)))
        return jnp.reshape(jnp.transpose(a), (6, r, _LANE))

    preds_t = to_channel_major_tiles(preds)
    targs_t = to_channel_major_tiles(targs)

    kernel = functools.partial(
        _yolo_loss_kernel,
        n_valid=n,
        tile_rows=tile_rows,
        num_tiles=num_tiles,
        needs_mask=needs_mask,
        lambda_coord=float(lambda_coord),
        lambda_conf=float(lambda_conf),
        lambda_class=float(lambda_class),
    )

    block = pl.BlockSpec((6, tile_rows, _LANE), lambda i: (0, i, 0))
    out = pl.pallas_call(
        kernel,
        out_shape=jax.ShapeDtypeStruct((1, 1), jnp.float32),
        grid=(num_tiles,),
        in_specs=[block, block],
        out_specs=pl.BlockSpec(memory_space=pltpu.MemorySpace.SMEM),
        scratch_shapes=[pltpu.VMEM((tile_rows, _LANE), jnp.float32)],
        compiler_params=pltpu.CompilerParams(
            dimension_semantics=("arbitrary",)),
    )(preds_t, targs_t)
    return out[0, 0]


def _reference_loss(predictions, target, grid_size,
                    lambda_coord=1.0, lambda_conf=1.0, lambda_class=1.0):
    """Pure-JAX reference mirroring the PyTorch module."""
    p = jnp.reshape(predictions, (-1, grid_size, grid_size, 6)).astype(jnp.float32)
    t = jnp.reshape(target, (-1, grid_size, grid_size, 6)).astype(jnp.float32)
    pb = jnp.reshape(p[..., :4], (-1, 4))
    tb = jnp.reshape(t[..., :4], (-1, 4))

    px1, py1 = pb[:, 0] - pb[:, 2] / 2, pb[:, 1] - pb[:, 3] / 2
    px2, py2 = pb[:, 0] + pb[:, 2] / 2, pb[:, 1] + pb[:, 3] / 2
    tx1, ty1 = tb[:, 0] - tb[:, 2] / 2, tb[:, 1] - tb[:, 3] / 2
    tx2, ty2 = tb[:, 0] + tb[:, 2] / 2, tb[:, 1] + tb[:, 3] / 2
    ix1, iy1 = jnp.maximum(px1, tx1), jnp.maximum(py1, ty1)
    ix2, iy2 = jnp.minimum(px2, tx2), jnp.minimum(py2, ty2)
    inter = jnp.maximum(ix2 - ix1, 0) * jnp.maximum(iy2 - iy1, 0)
    union = (px2 - px1) * (py2 - py1) + (tx2 - tx1) * (ty2 - ty1) - inter
    iou = inter / jnp.maximum(union, 1e-6)

    def bce(x, z):
        return jnp.mean(jnp.maximum(x, 0) - x * z + jnp.log1p(jnp.exp(-jnp.abs(x))))

    return (iou.mean() * lambda_coord
            + lambda_conf * bce(p[..., 4], t[..., 4])
            + lambda_class * bce(p[..., 5], t[..., 5]))


if __name__ == "__main__":
    grid_size = 8
    batch = 2
    key = jax.random.PRNGKey(0)
    k1, k2, k3 = jax.random.split(key, 3)

    # predictions: raw logits / box params; target: boxes in [0,1], binary conf/class
    predictions = jax.random.normal(k1, (batch, grid_size, grid_size, 6), jnp.float32)
    t_boxes = jax.random.uniform(k2, (batch, grid_size, grid_size, 4), jnp.float32)
    t_flags = (jax.random.uniform(k3, (batch, grid_size, grid_size, 2)) > 0.5
               ).astype(jnp.float32)
    target = jnp.concatenate([t_boxes, t_flags], axis=-1)

    loss = yolo_loss_iou(predictions, target, grid_size)
    loss = jax.block_until_ready(loss)

    ref = _reference_loss(predictions, target, grid_size)
    assert jnp.allclose(loss, ref, rtol=1e-5, atol=1e-5), (loss, ref)

    print("KERNEL_OK")
</pallas_src>

<mosaic_0001>
module attributes {stable_mosaic.version = 11 : i64} {
  func.func @_yolo_loss_kernel(%arg0: i32, %arg1: memref<6x8x128xf32, #tpu.memory_space<vmem>>, %arg2: memref<6x8x128xf32, #tpu.memory_space<vmem>>, %arg3: memref<1x1xf32, #tpu.memory_space<smem>>, %arg4: memref<8x128xf32, #tpu.memory_space<vmem>>) attributes {dimension_semantics = [#tpu.dimension_semantics<arbitrary>], iteration_bounds = array<i64: 1>, scalar_prefetch = 0 : i64, scratch_operands = 1 : i64, tpu.core_type = #tpu.core_type<tc>, window_params = [{transform_indices = @transform_0, window_bounds = array<i64: 6, 8, 128>}, {transform_indices = @transform_1, window_bounds = array<i64: 6, 8, 128>}, {transform_indices = @transform_2, window_bounds = array<i64: 1, 1>}]} {
    %c0_i32 = arith.constant 0 : i32
    %0 = arith.cmpi eq, %arg0, %c0_i32 : i32
    %1 = arith.extui %0 : i1 to i32
    %c0_i32_0 = arith.constant 0 : i32
    %2 = arith.cmpi ne, %1, %c0_i32_0 : i32
    scf.if %2 {
      %cst_29 = arith.constant 0.000000e+00 : f32
      %109 = vector.broadcast %cst_29 : f32 to vector<8x128xf32>
      %c0_30 = arith.constant 0 : index
      %c0_31 = arith.constant 0 : index
      %110 = vector.load %arg4[%c0_30, %c0_31] : memref<8x128xf32, #tpu.memory_space<vmem>>, vector<8x128xf32>
      tpu.vector_store %arg4[%c0_30, %c0_31], %109 {strides = array<i32>} : memref<8x128xf32, #tpu.memory_space<vmem>>, vector<8x128xf32>,
      %cst_32 = arith.constant 0.000000e+00 : f32
      %c0_33 = arith.constant 0 : index
      %c0_34 = arith.constant 0 : index
      %111 = memref.load %arg3[%c0_33, %c0_34] : memref<1x1xf32, #tpu.memory_space<smem>>
      memref.store %cst_32, %arg3[%c0_33, %c0_34] : memref<1x1xf32, #tpu.memory_space<smem>>
    } else {
    }
    %c0 = arith.constant 0 : index
    %c0_1 = arith.constant 0 : index
    %c0_2 = arith.constant 0 : index
    %3 = vector.load %arg1[%c0, %c0_1, %c0_2] : memref<6x8x128xf32, #tpu.memory_space<vmem>>, vector<6x8x128xf32>
    %c0_3 = arith.constant 0 : index
    %c0_4 = arith.constant 0 : index
    %c0_5 = arith.constant 0 : index
    %4 = vector.load %arg2[%c0_3, %c0_4, %c0_5] : memref<6x8x128xf32, #tpu.memory_space<vmem>>, vector<6x8x128xf32>
    %5 = vector.extract_strided_slice %3 {offsets = [0, 0, 0], sizes = [1, 8, 128], strides = [1, 1, 1]} : vector<6x8x128xf32> to vector<1x8x128xf32>
    %6 = vector.shape_cast %5 : vector<1x8x128xf32> to vector<8x128xf32>
    %7 = vector.extract_strided_slice %3 {offsets = [1, 0, 0], sizes = [1, 8, 128], strides = [1, 1, 1]} : vector<6x8x128xf32> to vector<1x8x128xf32>
    %8 = vector.shape_cast %7 : vector<1x8x128xf32> to vector<8x128xf32>
    %9 = vector.extract_strided_slice %3 {offsets = [2, 0, 0], sizes = [1, 8, 128], strides = [1, 1, 1]} : vector<6x8x128xf32> to vector<1x8x128xf32>
    %10 = vector.shape_cast %9 : vector<1x8x128xf32> to vector<8x128xf32>
    %11 = vector.extract_strided_slice %3 {offsets = [3, 0, 0], sizes = [1, 8, 128], strides = [1, 1, 1]} : vector<6x8x128xf32> to vector<1x8x128xf32>
    %12 = vector.shape_cast %11 : vector<1x8x128xf32> to vector<8x128xf32>
    %13 = vector.extract_strided_slice %4 {offsets = [0, 0, 0], sizes = [1, 8, 128], strides = [1, 1, 1]} : vector<6x8x128xf32> to vector<1x8x128xf32>
    %14 = vector.shape_cast %13 : vector<1x8x128xf32> to vector<8x128xf32>
    %15 = vector.extract_strided_slice %4 {offsets = [1, 0, 0], sizes = [1, 8, 128], strides = [1, 1, 1]} : vector<6x8x128xf32> to vector<1x8x128xf32>
    %16 = vector.shape_cast %15 : vector<1x8x128xf32> to vector<8x128xf32>
    %17 = vector.extract_strided_slice %4 {offsets = [2, 0, 0], sizes = [1, 8, 128], strides = [1, 1, 1]} : vector<6x8x128xf32> to vector<1x8x128xf32>
    %18 = vector.shape_cast %17 : vector<1x8x128xf32> to vector<8x128xf32>
    %19 = vector.extract_strided_slice %4 {offsets = [3, 0, 0], sizes = [1, 8, 128], strides = [1, 1, 1]} : vector<6x8x128xf32> to vector<1x8x128xf32>
    %20 = vector.shape_cast %19 : vector<1x8x128xf32> to vector<8x128xf32>
    %cst = arith.constant 5.000000e-01 : f32
    %21 = vector.broadcast %cst : f32 to vector<8x128xf32>
    %22 = arith.mulf %10, %21 : vector<8x128xf32>
    %23 = arith.subf %6, %22 : vector<8x128xf32>
    %cst_6 = arith.constant 5.000000e-01 : f32
    %24 = vector.broadcast %cst_6 : f32 to vector<8x128xf32>
    %25 = arith.mulf %12, %24 : vector<8x128xf32>
    %26 = arith.subf %8, %25 : vector<8x128xf32>
    %cst_7 = arith.constant 5.000000e-01 : f32
    %27 = vector.broadcast %cst_7 : f32 to vector<8x128xf32>
    %28 = arith.mulf %10, %27 : vector<8x128xf32>
    %29 = arith.addf %6, %28 : vector<8x128xf32>
    %cst_8 = arith.constant 5.000000e-01 : f32
    %30 = vector.broadcast %cst_8 : f32 to vector<8x128xf32>
    %31 = arith.mulf %12, %30 : vector<8x128xf32>
    %32 = arith.addf %8, %31 : vector<8x128xf32>
    %cst_9 = arith.constant 5.000000e-01 : f32
    %33 = vector.broadcast %cst_9 : f32 to vector<8x128xf32>
    %34 = arith.mulf %18, %33 : vector<8x128xf32>
    %35 = arith.subf %14, %34 : vector<8x128xf32>
    %cst_10 = arith.constant 5.000000e-01 : f32
    %36 = vector.broadcast %cst_10 : f32 to vector<8x128xf32>
    %37 = arith.mulf %20, %36 : vector<8x128xf32>
    %38 = arith.subf %16, %37 : vector<8x128xf32>
    %cst_11 = arith.constant 5.000000e-01 : f32
    %39 = vector.broadcast %cst_11 : f32 to vector<8x128xf32>
    %40 = arith.mulf %18, %39 : vector<8x128xf32>
    %41 = arith.addf %14, %40 : vector<8x128xf32>
    %cst_12 = arith.constant 5.000000e-01 : f32
    %42 = vector.broadcast %cst_12 : f32 to vector<8x128xf32>
    %43 = arith.mulf %20, %42 : vector<8x128xf32>
    %44 = arith.addf %16, %43 : vector<8x128xf32>
    %45 = arith.minimumf %29, %41 : vector<8x128xf32>
    %46 = arith.maximumf %23, %35 : vector<8x128xf32>
    %47 = arith.subf %45, %46 : vector<8x128xf32>
    %cst_13 = arith.constant 0.000000e+00 : f32
    %48 = vector.broadcast %cst_13 : f32 to vector<8x128xf32>
    %49 = arith.maximumf %47, %48 : vector<8x128xf32>
    %50 = arith.minimumf %32, %44 : vector<8x128xf32>
    %51 = arith.maximumf %26, %38 : vector<8x128xf32>
    %52 = arith.subf %50, %51 : vector<8x128xf32>
    %cst_14 = arith.constant 0.000000e+00 : f32
    %53 = vector.broadcast %cst_14 : f32 to vector<8x128xf32>
    %54 = arith.maximumf %52, %53 : vector<8x128xf32>
    %55 = arith.mulf %49, %54 : vector<8x128xf32>
    %56 = arith.subf %29, %23 : vector<8x128xf32>
    %57 = arith.subf %32, %26 : vector<8x128xf32>
    %58 = arith.mulf %56, %57 : vector<8x128xf32>
    %59 = arith.subf %41, %35 : vector<8x128xf32>
    %60 = arith.subf %44, %38 : vector<8x128xf32>
    %61 = arith.mulf %59, %60 : vector<8x128xf32>
    %62 = arith.addf %58, %61 : vector<8x128xf32>
    %63 = arith.subf %62, %55 : vector<8x128xf32>
    %cst_15 = arith.constant 9.99999997E-7 : f32
    %64 = vector.broadcast %cst_15 : f32 to vector<8x128xf32>
    %65 = arith.maximumf %63, %64 : vector<8x128xf32>
    %66 = arith.divf %55, %65 : vector<8x128xf32>
    %67 = vector.extract_strided_slice %3 {offsets = [4, 0, 0], sizes = [2, 8, 128], strides = [1, 1, 1]} : vector<6x8x128xf32> to vector<2x8x128xf32>
    %68 = vector.extract_strided_slice %4 {offsets = [4, 0, 0], sizes = [2, 8, 128], strides = [1, 1, 1]} : vector<6x8x128xf32> to vector<2x8x128xf32>
    %cst_16 = arith.constant 0.000000e+00 : f32
    %69 = vector.broadcast %cst_16 : f32 to vector<2x8x128xf32>
    %70 = arith.maximumf %67, %69 : vector<2x8x128xf32>
    %71 = arith.mulf %67, %68 : vector<2x8x128xf32>
    %72 = arith.subf %70, %71 : vector<2x8x128xf32>
    %73 = math.absf %67 : vector<2x8x128xf32>
    %cst_17 = arith.constant 0.000000e+00 : f32
    %74 = vector.broadcast %cst_17 : f32 to vector<2x8x128xf32>
    %75 = arith.subf %74, %73 : vector<2x8x128xf32>
    %76 = math.exp %75 : vector<2x8x128xf32>
    %77 = math.log1p %76 : vector<2x8x128xf32>
    %78 = arith.addf %72, %77 : vector<2x8x128xf32>
    %cst_18 = arith.constant 1.000000e+00 : f32
    %79 = vector.broadcast %cst_18 : f32 to vector<8x128xf32>
    %80 = arith.mulf %79, %66 : vector<8x128xf32>
    %81 = vector.extract_strided_slice %78 {offsets = [0, 0, 0], sizes = [1, 8, 128], strides = [1, 1, 1]} : vector<2x8x128xf32> to vector<1x8x128xf32>
    %82 = vector.shape_cast %81 : vector<1x8x128xf32> to vector<8x128xf32>
    %cst_19 = arith.constant 1.000000e+00 : f32
    %83 = vector.broadcast %cst_19 : f32 to vector<8x128xf32>
    %84 = arith.mulf %83, %82 : vector<8x128xf32>
    %85 = arith.addf %80, %84 : vector<8x128xf32>
    %86 = vector.extract_strided_slice %78 {offsets = [1, 0, 0], sizes = [1, 8, 128], strides = [1, 1, 1]} : vector<2x8x128xf32> to vector<1x8x128xf32>
    %87 = vector.shape_cast %86 : vector<1x8x128xf32> to vector<8x128xf32>
    %cst_20 = arith.constant 1.000000e+00 : f32
    %88 = vector.broadcast %cst_20 : f32 to vector<8x128xf32>
    %89 = arith.mulf %88, %87 : vector<8x128xf32>
    %90 = arith.addf %85, %89 : vector<8x128xf32>
    %c1024_i32 = arith.constant 1024 : i32
    %91 = arith.muli %arg0, %c1024_i32 : i32
    %92 = tpu.iota {dimensions = array<i32: 0>} : vector<8x128xi32>
    %93 = tpu.iota {dimensions = array<i32: 1>} : vector<8x128xi32>
    %c128_i32 = arith.constant 128 : i32
    %94 = vector.broadcast %c128_i32 : i32 to vector<8x128xi32>
    %95 = arith.muli %92, %94 : vector<8x128xi32>
    %96 = vector.broadcast %91 : i32 to vector<8x128xi32>
    %97 = arith.addi %96, %95 : vector<8x128xi32>
    %98 = arith.addi %97, %93 : vector<8x128xi32>
    %c128_i32_21 = arith.constant 128 : i32
    %99 = vector.broadcast %c128_i32_21 : i32 to vector<8x128xi32>
    %100 = arith.cmpi slt, %98, %99 : vector<8x128xi32>
    %cst_22 = arith.constant 0.000000e+00 : f32
    %101 = vector.broadcast %cst_22 : f32 to vector<8x128xf32>
    %102 = arith.select %100, %90, %101 : vector<8x128xi1>, vector<8x128xf32>
    %c0_23 = arith.constant 0 : index
    %c0_24 = arith.constant 0 : index
    %103 = vector.load %arg4[%c0_23, %c0_24] : memref<8x128xf32, #tpu.memory_space<vmem>>, vector<8x128xf32>
    %104 = arith.addf %103, %102 : vector<8x128xf32>
    %c0_25 = arith.constant 0 : index
    %c0_26 = arith.constant 0 : index
    %105 = vector.load %arg4[%c0_25, %c0_26] : memref<8x128xf32, #tpu.memory_space<vmem>>, vector<8x128xf32>
    tpu.vector_store %arg4[%c0_25, %c0_26], %104 {strides = array<i32>} : memref<8x128xf32, #tpu.memory_space<vmem>>, vector<8x128xf32>,
    %c0_i32_27 = arith.constant 0 : i32
    %106 = arith.cmpi eq, %arg0, %c0_i32_27 : i32
    %107 = arith.extui %106 : i1 to i32
    %c0_i32_28 = arith.constant 0 : i32
    %108 = arith.cmpi ne, %107, %c0_i32_28 : i32
    scf.if %108 {
      %c0_29 = arith.constant 0 : index
      %c0_30 = arith.constant 0 : index
      %109 = vector.load %arg4[%c0_29, %c0_30] : memref<8x128xf32, #tpu.memory_space<vmem>>, vector<8x128xf32>
      %110 = vector.shape_cast %109 : vector<8x128xf32> to vector<1x8x128xf32>
      %cst_31 = arith.constant dense<0.000000e+00> : vector<1xf32>
      %111 = vector.multi_reduction <add>, %110, %cst_31 [1, 2] : vector<1x8x128xf32> to vector<1xf32>
      %112 = vector.shape_cast %111 : vector<1xf32> to vector<1x1x1xf32>
      %113 = vector.extract %112[0, 0, 0] : f32 from vector<1x1x1xf32>
      %cst_32 = arith.constant 7.812500e-03 : f32
      %114 = arith.mulf %113, %cst_32 : f32
      %c0_33 = arith.constant 0 : index
      %c0_34 = arith.constant 0 : index
      %115 = memref.load %arg3[%c0_33, %c0_34] : memref<1x1xf32, #tpu.memory_space<smem>>
      memref.store %114, %arg3[%c0_33, %c0_34] : memref<1x1xf32, #tpu.memory_space<smem>>
    } else {
    }
    return
  }
  func.func @transform_0(%arg0: i32) -> (i32, i32, i32) {
    %c0_i32 = arith.constant 0 : i32
    %c0_i32_0 = arith.constant 0 : i32
    %c0_i32_1 = arith.constant 0 : i32
    return %c0_i32, %arg0, %c0_i32_0 : i32, i32, i32
  }
  func.func @transform_1(%arg0: i32) -> (i32, i32, i32) {
    %c0_i32 = arith.constant 0 : i32
    %c0_i32_0 = arith.constant 0 : i32
    %c0_i32_1 = arith.constant 0 : i32
    return %c0_i32, %arg0, %c0_i32_0 : i32, i32, i32
  }
  func.func @transform_2(%arg0: i32) -> (i32, i32) {
    %c0_i32 = arith.constant 0 : i32
    %c0_i32_0 = arith.constant 0 : i32
    %c0_i32_1 = arith.constant 0 : i32
    return %c0_i32, %c0_i32_0 : i32, i32
  }
}

</mosaic_0001>

<llo_original>
// kernel: tpu_custom_call.1
$region0: #{tpu_custom_call.1}
  #allocation0 [shape = 'u32[]', space=smem, size = 0x4, offset = 0x4, fixed_abs, tag = 'smem constant byte address 0x4 - core index']
  #allocation1 [shape = 'u32[144,128]{1,0:T(1,128)}', space=vmem, size = 0x12000, scoped, tag = 'internal scratch']
  #allocation2 [shape = 'f32[8,128]{1,0:T(8,128)}', space=vmem, size = 0x1000, scoped, tag = 'scratch operand']
  %s0 = inlined_call_operand.hbm [shape: f32[6,8,128], index: 0, kind: input, shape index: {}]
  %s1 = inlined_call_operand.hbm [shape: f32[6,8,128], index: 1, kind: input, shape index: {}]
  %s2 = inlined_call_operand.hbm [shape: f32[1,1], index: 2, kind: output, shape index: {}]
  %s3 = sld [smem:[#allocation0]]
  $region34: #{tpu_custom_call.1} parent=0
    _
  %s5 = ssub.s32 1, %s3
  %s6 = scalar_select 0, %s5, %s3
  $region1: #{tpu_custom_call.1} parent=0
    #allocation3 [shape = 'u8[24576]{0}', space=vmem, size = 0x6000, scoped, tag = 'input window, operand 0, single buffered']
    #allocation4 [shape = 's32[1]{0}', space=sflag, size = 0x4, scoped, tag = 'scoped memory for tpu_custom_call.1']
    #allocation5 [shape = 's32[1]{0}', space=sflag, size = 0x4, scoped, tag = 'scoped memory for tpu_custom_call.1']
    #allocation6 [shape = 'u8[24576]{0}', space=vmem, size = 0x6000, scoped, tag = 'input window, operand 1, single buffered']
    #allocation7 [shape = 's32[1]{0}', space=sflag, size = 0x4, scoped, tag = 'scoped memory for tpu_custom_call.1']
    #allocation8 [shape = 'u8[512]{0}', space=smem, size = 0x200, scoped, tag = 'output window, operand 0, single buffered']
    %7 = vsyncpa [#allocation4], 0
    %8 = vsyncpa [#allocation7], 0
    %9 = vsyncpa [#allocation5], 0
    // Predicated region
    $region2: #{tpu_custom_call.1} parent=1 // pred_check
      _
    $region3: #{tpu_custom_call.1} parent=1 // pred_check_branch
      %11 = sbr.rel (0) target = $region5
    $region4: #{tpu_custom_call.1} parent=1 // pred_region
      %s13 = ssub.s32 768, 768
      %14 = vsyncadd [#allocation4], %s13
      %s15 = sshll.u32 [#allocation3], 4
      %s16 = int_to_ptr.vmem [resolvable:$true] %s15
      %21 = dma.hbm_to_vmem [thread:$0]  %s0, 768, %s16, [#allocation4], 128, 128, 8
    $region5: #{tpu_custom_call.1} parent=1 // pred_fallthru
      _
    // Predicated region
    $region6: #{tpu_custom_call.1} parent=1 // pred_check
      _
    $region7: #{tpu_custom_call.1} parent=1 // pred_check_branch
      %23 = sbr.rel (0) target = $region9
    $region8: #{tpu_custom_call.1} parent=1 // pred_region
      %s25 = ssub.s32 768, 768
      %26 = vsyncadd [#allocation7], %s25
      %s27 = sshll.u32 [#allocation6], 4
      %s28 = int_to_ptr.vmem [resolvable:$true] %s27
      %33 = dma.hbm_to_vmem [thread:$0]  %s1, 768, %s28, [#allocation7], 128, 128, 8
    $region9: #{tpu_custom_call.1} parent=1 // pred_fallthru
      _
    // Predicated region
    $region10: #{tpu_custom_call.1} parent=1 // pred_check
      _
    $region11: #{tpu_custom_call.1} parent=1 // pred_check_branch
      %35 = sbr.rel (0) target = $region13
    $region12: #{tpu_custom_call.1} parent=1 // pred_region
      %36 = dma.done [#allocation4], 768
    $region13: #{tpu_custom_call.1} parent=1 // pred_fallthru
      _
    // Predicated region
    $region14: #{tpu_custom_call.1} parent=1 // pred_check
      _
    $region15: #{tpu_custom_call.1} parent=1 // pred_check_branch
      %38 = sbr.rel (0) target = $region17
    $region16: #{tpu_custom_call.1} parent=1 // pred_region
      %39 = dma.done [#allocation7], 768
    $region17: #{tpu_custom_call.1} parent=1 // pred_fallthru
      _
    %p40 = scmp.eq.s32.totalorder 0, 0
    // Predicated region
    $region18: #{tpu_custom_call.1} parent=1 // pred_check
      %p41 = pneg %p40
    $region19: #{tpu_custom_call.1} parent=1 // pred_check_branch
      %43 = sbr.rel (%p41) target = $region21
    $region20: #{tpu_custom_call.1} parent=1 // pred_region
      %44 = vst [vmem:[#allocation2] sm:$0xff] 0.0
      %s45 = scalar_lea.smem [#allocation8], 0
      %46 = sst [smem:[%s45]] 0.0
    $region21: #{tpu_custom_call.1} parent=1 // pred_fallthru
      _
    %v47 = vld [vmem:[#allocation3] sm:$0xff]
    %v48 = vld [vmem:[#allocation3 + $0x8] sm:$0xff]
    %v49 = vld [vmem:[#allocation3 + $0x10] sm:$0xff]
    %v50 = vld [vmem:[#allocation3 + $0x18] sm:$0xff]
    %v51 = vld [vmem:[#allocation3 + $0x20] sm:$0xff]
    %v52 = vld [vmem:[#allocation3 + $0x28] sm:$0xff]
    %v53 = vld [vmem:[#allocation6] sm:$0xff]
    %v54 = vld [vmem:[#allocation6 + $0x8] sm:$0xff]
    %v55 = vld [vmem:[#allocation6 + $0x10] sm:$0xff]
    %v56 = vld [vmem:[#allocation6 + $0x18] sm:$0xff]
    %v57 = vld [vmem:[#allocation6 + $0x20] sm:$0xff]
    %v58 = vld [vmem:[#allocation6 + $0x28] sm:$0xff]
    %v59 = vmul.f32 %v49, 0.5
    %v60 = vsub.f32 %v47, %v59
    %v61 = vmul.f32 %v50, 0.5
    %v62 = vsub.f32 %v48, %v61
    %v63 = vadd.f32 %v47, %v59
    %v64 = vadd.f32 %v48, %v61
    %v65 = vmul.f32 %v55, 0.5
    %v66 = vsub.f32 %v53, %v65
    %v67 = vmul.f32 %v56, 0.5
    %v68 = vsub.f32 %v54, %v67
    %v69 = vadd.f32 %v53, %v65
    %v70 = vadd.f32 %v54, %v67
    %v71 = vmin.f32 %v63, %v69
    %v72 = vmax.f32 %v60, %v66
    %v73 = vsub.f32 %v71, %v72
    %v74 = vmax.f32 %v73, 0.0
    %v75 = vmin.f32 %v64, %v70
    %v76 = vmax.f32 %v62, %v68
    %v77 = vsub.f32 %v75, %v76
    %v78 = vmax.f32 %v77, 0.0
    %v79 = vmul.f32 %v74, %v78
    %v80 = vsub.f32 %v63, %v60
    %v81 = vsub.f32 %v64, %v62
    %v82 = vmul.f32 %v80, %v81
    %v83 = vsub.f32 %v69, %v66
    %v84 = vsub.f32 %v70, %v68
    %v85 = vmul.f32 %v83, %v84
    %v86 = vadd.f32 %v82, %v85
    %v87 = vsub.f32 %v86, %v79
    %v88 = vmax.f32 %v87, 1e-06
    %v89 = vrcp.pop %v88
    %v90 = vmul.f32 %v79, %v89
    %v91 = vmax.f32 %v51, 0.0
    %v92 = vmax.f32 %v52, 0.0
    %v93 = vmul.f32 %v51, %v57
    %v94 = vmul.f32 %v52, %v58
    %v95 = vsub.f32 %v91, %v93
    %v96 = vsub.f32 %v92, %v94
    %v97 = vand.u32 2147483647, %v51
    %v98 = vand.u32 2147483647, %v52
    %v99 = vsub.f32 0.0, %v97
    %v100 = vsub.f32 0.0, %v98
    %v101 = vmul.f32 %v99, 1.442695
    %v102 = vpow.pop %v101
    %v103 = vmul.f32 %v100, 1.442695
    %v104 = vpow.pop %v103
    %v105 = vadd.f32 %v102, 1.0
    %v106 = vlog2.pop %v105
    %v107 = vmul.f32 %v106, 0.6931472
    %v108 = vmul.f32 -0.5, %v102
    %v109 = vadd.f32 %v108, 1.0
    %v110 = vmul.f32 %v109, %v102
    %v111 = vand.u32 2147483647, %v102
    %vm112 = vcmp.lt.f32.partialorder %v111, 0.0004427343
    %v113 = vsel %vm112, %v110, %v107
    %v114 = vadd.f32 %v104, 1.0
    %v115 = vlog2.pop %v114
    %v116 = vmul.f32 %v115, 0.6931472
    %v117 = vmul.f32 -0.5, %v104
    %v118 = vadd.f32 %v117, 1.0
    %v119 = vmul.f32 %v118, %v104
    %v120 = vand.u32 2147483647, %v104
    %vm121 = vcmp.lt.f32.partialorder %v120, 0.0004427343
    %v122 = vsel %vm121, %v119, %v116
    %v123 = vadd.f32 %v95, %v113
    %v124 = vadd.f32 %v96, %v122
    %v125 = vadd.f32 %v90, %v123
    %v126 = vadd.f32 %v125, %v124
    %s127 = smul.u32 0, 1024
    %v128 = vlaneseq
    %v129 = vshrl.u32 %v128, 7
    %v130 = vlaneseq
    %v131 = vand.u32 %v130, 127
    %v132 = vmul.u32 %v129, 128
    %v133 = vstv %s127
    %v134 = vadd.s32 %v133, %v132
    %v135 = vadd.s32 %v134, %v131
    %vm136 = vcmp.lt.s32.totalorder %v135, 128
    %v137 = vsel %vm136, %v126, 0.0
    %v138 = vld [vmem:[#allocation2] sm:$0xff]
    %v139 = vadd.f32 %v138, %v137
    %140 = vst [vmem:[#allocation2] sm:$0xff] %v139
    // Predicated region
    $region22: #{tpu_custom_call.1} parent=1 // pred_check
      %p141 = pneg %p40
    $region23: #{tpu_custom_call.1} parent=1 // pred_check_branch
      %143 = sbr.rel (%p141) target = $region25
    $region24: #{tpu_custom_call.1} parent=1 // pred_region
      %v144 = vld [vmem:[#allocation2] sm:$0xff]
      %145 = vadd.xlane.f32.xlu0 %v144
      %v146 = vpop.xlane.xlu0 %145
      %v147 = vrot.slane %v146, 4
      %v148 = vadd.f32 %v146, %v147
      %v149 = vrot.slane %v148, 2
      %v150 = vadd.f32 %v148, %v149
      %v151 = vrot.slane %v150, 1
      %v152 = vadd.f32 %v150, %v151
      %s153 = vtos %v152
      %s154 = smul.f32 %s153, 0.0078125
      %s155 = scalar_lea.smem [#allocation8], 0
      %156 = sst [smem:[%s155]] %s154
    $region25: #{tpu_custom_call.1} parent=1 // pred_fallthru
      _
    // Predicated region
    $region26: #{tpu_custom_call.1} parent=1 // pred_check
      _
    $region27: #{tpu_custom_call.1} parent=1 // pred_check_branch
      %158 = sbr.rel (0) target = $region29
    $region28: #{tpu_custom_call.1} parent=1 // pred_region
      %s160 = ssub.s32 16, 16
      %161 = vsyncadd [#allocation5], %s160
      %164 = dma.smem_to_hbm [#allocation8], 16, %s2, [#allocation5]
    $region29: #{tpu_custom_call.1} parent=1 // pred_fallthru
      _
    // Predicated region
    $region30: #{tpu_custom_call.1} parent=1 // pred_check
      _
    $region31: #{tpu_custom_call.1} parent=1 // pred_check_branch
      %166 = sbr.rel (0) target = $region33
    $region32: #{tpu_custom_call.1} parent=1 // pred_region
      %167 = dma.done [#allocation5], 16
    $region33: #{tpu_custom_call.1} parent=1 // pred_fallthru
      _
    %168 = sfence
    %169 = vsyncpa [#allocation4], 1
    %170 = vsyncpa [#allocation7], 1
    %171 = vsyncpa [#allocation5], 1

</llo_original>
